<compile_context>
chip_gen: v6e
topology: v6e:2x2x1
jax: 0.10.0
libtpu: 0.0.40
codegen_flags: <defaults>
</compile_context>

<pallas_src>
import functools

import jax
import jax.numpy as jnp
from jax import lax
from jax.experimental import pallas as pl
from jax.experimental.pallas import tpu as pltpu


def _attention_kernel(x_ref, wqkv_ref, wp_ref, bp_ref, o_ref, qkv_ref, *,
                      tq, in_dim):
    D = in_dim
    i = pl.program_id(1)

    # ---- once per batch element: fused QKV projection into VMEM scratch ----
    @pl.when(i == 0)
    def _():
        x = x_ref[0]                                        # (N, C), input dtype
        qkv = jnp.dot(x, wqkv_ref[...],
                      preferred_element_type=jnp.float32)   # (N, 3D), f32 acc
        qkv = qkv.astype(qkv_ref.dtype)
        qkv_ref[0] = qkv[:, 0 * D:1 * D]                    # q (scale folded into Wq)
        qkv_ref[1] = qkv[:, 1 * D:2 * D]                    # k
        qkv_ref[2] = qkv[:, 2 * D:3 * D]                    # v

    # ---- per q-tile attention ----
    row0 = pl.multiple_of(i * tq, tq)
    q = qkv_ref[0, pl.ds(row0, tq), :]                      # (tq, D)
    k = qkv_ref[1]                                          # (N, D)
    v = qkv_ref[2]                                          # (N, D)

    # scores (tq, N): contract the last dims of q and k (no explicit k.T).
    s = lax.dot_general(q, k, dimension_numbers=(((1,), (1,)), ((), ())),
                        preferred_element_type=jnp.float32)

    # softmax over keys, all elementwise math in f32.
    s = s - jnp.max(s, axis=-1, keepdims=True)
    p = jnp.exp(s)
    p = p * pl.reciprocal(jnp.sum(p, axis=-1, keepdims=True), approx=True)

    # out = proj(attn @ v) + v    (attn_drop / proj_drop are identity, p=0.0)
    o = jnp.dot(p.astype(v.dtype), v,
                preferred_element_type=jnp.float32)          # (tq, D), f32
    o = jnp.dot(o.astype(wp_ref.dtype), wp_ref[...],
                preferred_element_type=jnp.float32)          # (tq, D), f32
    o = o + bp_ref[...].astype(jnp.float32)                  # bias broadcast

    v_tile = qkv_ref[2, pl.ds(row0, tq), :].astype(jnp.float32)
    o_ref[0] = (v_tile + o).astype(o_ref.dtype)


def _pick_q_tile(n, max_tile=256):
    """Largest multiple-of-8 divisor of n that is <= max_tile (fallback: n)."""
    best = None
    for t in range(8, min(n, max_tile) + 1, 8):
        if n % t == 0:
            best = t
    return best if best is not None else n


def t2t_attention(x, w_qkv, w_proj, b_proj, *, scale, in_dim, q_tile=None):
    """x: (B, N, C); w_qkv: (C, 3*in_dim) packed [q|k|v]; w_proj: (D, D);
    b_proj: (1, D).  Weights are in "y = x @ W" layout (torch weight^T)."""
    B, N, C = x.shape
    D = in_dim
    assert w_qkv.shape == (C, 3 * D)
    assert w_proj.shape == (D, D)
    assert b_proj.shape == (1, D)

    # Fold the softmax scale into the Wq columns (one-time constant transform).
    w_qkv = jnp.concatenate([w_qkv[:, :D] * scale, w_qkv[:, D:]], axis=-1)

    tq = q_tile if q_tile is not None else _pick_q_tile(N)
    assert N % tq == 0
    nt = N // tq

    kernel = functools.partial(_attention_kernel, tq=tq, in_dim=D)

    return pl.pallas_call(
        kernel,
        out_shape=jax.ShapeDtypeStruct((B, N, D), x.dtype),
        grid_spec=pltpu.PrefetchScalarGridSpec(
            num_scalar_prefetch=0,
            grid=(B, nt),
            in_specs=[
                # Full per-batch x; block index is constant in i, so it is
                # only re-DMA'd when b changes.
                pl.BlockSpec((1, N, C), lambda b, i: (b, 0, 0)),
                # Constant-index weights: Pallas keeps them resident.
                pl.BlockSpec((C, 3 * D), lambda b, i: (0, 0)),   # fused Wqkv
                pl.BlockSpec((D, D), lambda b, i: (0, 0)),       # Wproj
                pl.BlockSpec((1, D), lambda b, i: (0, 0)),       # bproj
            ],
            out_specs=pl.BlockSpec((1, tq, D), lambda b, i: (b, i, 0)),
            # Per-batch Q/K/V cache (persists across the q-tile axis).
            scratch_shapes=[pltpu.VMEM((3, N, D), x.dtype)],
        ),
        compiler_params=pltpu.CompilerParams(
            # q-tile axis must be "arbitrary" (scratch carries K/V across it).
            dimension_semantics=("parallel", "arbitrary"),
            vmem_limit_bytes=32 * 1024 * 1024,
        ),
    )(x, w_qkv, w_proj, b_proj)


def _reference(x, w_qkv, w_proj, b_proj, scale, in_dim):
    # Pure-JAX reference matching the PyTorch forward (num_heads == 1).
    D = in_dim
    q = x @ w_qkv[:, :D]
    k = x @ w_qkv[:, D:2 * D]
    v = x @ w_qkv[:, 2 * D:]
    attn = jax.nn.softmax((q * scale) @ jnp.swapaxes(k, -2, -1), axis=-1)
    out = attn @ v
    out = out @ w_proj + b_proj[0]
    return v + out


if __name__ == "__main__":
    # Module hyper-params (num_heads must be 1 for the PyTorch reshape to be
    # valid — see header comment).
    B, N, dim, in_dim, num_heads = 2, 8, 32, 16, 1
    head_dim = dim // num_heads
    scale = head_dim ** (-0.5)

    key = jax.random.PRNGKey(0)
    kx, kqkv, kp, kb = jax.random.split(key, 4)

    x = jax.random.normal(kx, (B, N, dim), dtype=jnp.float32)

    # nn.Linear(dim, in_dim*3, bias=False): torch weight (3*in_dim, dim),
    # y = x @ W^T; columns [0:D | D:2D | 2D:3D] of W^T are Wq | Wk | Wv.
    w_qkv = (0.05 * jax.random.normal(kqkv, (3 * in_dim, dim),
                                      dtype=jnp.float32)).T       # (dim, 3D)
    # nn.Linear(in_dim, in_dim): weight (in_dim, in_dim) + bias.
    w_proj = (0.05 * jax.random.normal(kp, (in_dim, in_dim),
                                       dtype=jnp.float32)).T      # (D, D)
    b_proj = 0.05 * jax.random.normal(kb, (1, in_dim), dtype=jnp.float32)

    ref = _reference(x, w_qkv, w_proj, b_proj, scale, in_dim)

    # f32 path (exact operands; approx reciprocal in the softmax).
    out = t2t_attention(x, w_qkv, w_proj, b_proj, scale=scale, in_dim=in_dim)
    out = jax.block_until_ready(out)
    assert out.shape == (B, N, in_dim)
    assert jnp.allclose(out, ref, atol=5e-3, rtol=5e-3), "f32 mismatch vs ref"

    # bf16 operand path (full-rate MXU on v6e/v7x); f32 accumulation inside.
    out_bf16 = t2t_attention(
        x.astype(jnp.bfloat16), w_qkv.astype(jnp.bfloat16),
        w_proj.astype(jnp.bfloat16), b_proj.astype(jnp.bfloat16),
        scale=scale, in_dim=in_dim)
    out_bf16 = jax.block_until_ready(out_bf16)
    assert jnp.allclose(out_bf16.astype(jnp.float32), ref,
                        atol=7e-2, rtol=7e-2), "bf16 mismatch vs ref"

    print("KERNEL_OK")
</pallas_src>

<mosaic_0001>
module attributes {stable_mosaic.version = 11 : i64} {
  func.func @_attention_kernel(%arg0: i32, %arg1: i32, %arg2: memref<1x8x32xf32, #tpu.memory_space<vmem>>, %arg3: memref<32x48xf32, #tpu.memory_space<vmem>>, %arg4: memref<16x16xf32, #tpu.memory_space<vmem>>, %arg5: memref<1x16xf32, #tpu.memory_space<vmem>>, %arg6: memref<1x8x16xf32, #tpu.memory_space<vmem>>, %arg7: memref<3x8x16xf32, #tpu.memory_space<vmem>>) attributes {dimension_semantics = [#tpu.dimension_semantics<parallel>, #tpu.dimension_semantics<arbitrary>], iteration_bounds = array<i64: 2, 1>, scalar_prefetch = 0 : i64, scratch_operands = 1 : i64, tpu.core_type = #tpu.core_type<tc>, window_params = [{transform_indices = @transform_0, window_bounds = array<i64: 1, 8, 32>}, {pipeline_mode = #tpu.pipeline_mode<synchronous>, transform_indices = @transform_1, window_bounds = array<i64: 32, 48>}, {pipeline_mode = #tpu.pipeline_mode<synchronous>, transform_indices = @transform_2, window_bounds = array<i64: 16, 16>}, {pipeline_mode = #tpu.pipeline_mode<synchronous>, transform_indices = @transform_3, window_bounds = array<i64: 1, 16>}, {transform_indices = @transform_4, window_bounds = array<i64: 1, 8, 16>}]} {
    %c0_i32 = arith.constant 0 : i32
    %0 = arith.cmpi eq, %arg1, %c0_i32 : i32
    %1 = arith.extui %0 : i1 to i32
    %c0_i32_0 = arith.constant 0 : i32
    %2 = arith.cmpi ne, %1, %c0_i32_0 : i32
    scf.if %2 {
      %c0_19 = arith.constant 0 : index
      %c0_20 = arith.constant 0 : index
      %c0_21 = arith.constant 0 : index
      %36 = vector.load %arg2[%c0_19, %c0_20, %c0_21] : memref<1x8x32xf32, #tpu.memory_space<vmem>>, vector<1x8x32xf32>
      %37 = vector.shape_cast %36 : vector<1x8x32xf32> to vector<8x32xf32>
      %c0_22 = arith.constant 0 : index
      %c0_23 = arith.constant 0 : index
      %38 = vector.load %arg3[%c0_22, %c0_23] : memref<32x48xf32, #tpu.memory_space<vmem>>, vector<32x48xf32>
      %cst_24 = arith.constant dense<0.000000e+00> : vector<8x48xf32>
      %39 = tpu.matmul %37, %38, %cst_24 {dimension_numbers = #tpu.dot_dimension_numbers<[1], [0], [0], [1], [0, 0, 1, 1], [], []>} : vector<8x32xf32>, vector<32x48xf32>, vector<8x48xf32> -> vector<8x48xf32>
      %40 = vector.extract_strided_slice %39 {offsets = [0, 0], sizes = [8, 16], strides = [1, 1]} : vector<8x48xf32> to vector<8x16xf32>
      %c0_25 = arith.constant 0 : index
      %c0_26 = arith.constant 0 : index
      %c0_27 = arith.constant 0 : index
      %41 = vector.load %arg7[%c0_25, %c0_26, %c0_27] : memref<3x8x16xf32, #tpu.memory_space<vmem>>, vector<1x8x16xf32>
      %42 = vector.shape_cast %41 : vector<1x8x16xf32> to vector<8x16xf32>
      %43 = vector.shape_cast %40 : vector<8x16xf32> to vector<1x8x16xf32>
      tpu.vector_store %arg7[%c0_25, %c0_26, %c0_27], %43 {strides = array<i32>} : memref<3x8x16xf32, #tpu.memory_space<vmem>>, vector<1x8x16xf32>,
      %44 = vector.extract_strided_slice %39 {offsets = [0, 16], sizes = [8, 16], strides = [1, 1]} : vector<8x48xf32> to vector<8x16xf32>
      %c1_28 = arith.constant 1 : index
      %c0_29 = arith.constant 0 : index
      %c0_30 = arith.constant 0 : index
      %45 = vector.load %arg7[%c1_28, %c0_29, %c0_30] : memref<3x8x16xf32, #tpu.memory_space<vmem>>, vector<1x8x16xf32>
      %46 = vector.shape_cast %45 : vector<1x8x16xf32> to vector<8x16xf32>
      %47 = vector.shape_cast %44 : vector<8x16xf32> to vector<1x8x16xf32>
      tpu.vector_store %arg7[%c1_28, %c0_29, %c0_30], %47 {strides = array<i32>} : memref<3x8x16xf32, #tpu.memory_space<vmem>>, vector<1x8x16xf32>,
      %48 = vector.extract_strided_slice %39 {offsets = [0, 32], sizes = [8, 16], strides = [1, 1]} : vector<8x48xf32> to vector<8x16xf32>
      %c2_31 = arith.constant 2 : index
      %c0_32 = arith.constant 0 : index
      %c0_33 = arith.constant 0 : index
      %49 = vector.load %arg7[%c2_31, %c0_32, %c0_33] : memref<3x8x16xf32, #tpu.memory_space<vmem>>, vector<1x8x16xf32>
      %50 = vector.shape_cast %49 : vector<1x8x16xf32> to vector<8x16xf32>
      %51 = vector.shape_cast %48 : vector<8x16xf32> to vector<1x8x16xf32>
      tpu.vector_store %arg7[%c2_31, %c0_32, %c0_33], %51 {strides = array<i32>} : memref<3x8x16xf32, #tpu.memory_space<vmem>>, vector<1x8x16xf32>,
    } else {
    }
    %c8_i32 = arith.constant 8 : i32
    %3 = arith.muli %arg1, %c8_i32 : i32
    %4 = tpu.assume_multiple %3, 8 : i32
    %c0 = arith.constant 0 : index
    %5 = arith.index_cast %4 : i32 to index
    %c0_1 = arith.constant 0 : index
    %6 = vector.load %arg7[%c0, %5, %c0_1] : memref<3x8x16xf32, #tpu.memory_space<vmem>>, vector<1x8x16xf32>
    %7 = vector.shape_cast %6 : vector<1x8x16xf32> to vector<8x16xf32>
    %c1 = arith.constant 1 : index
    %c0_2 = arith.constant 0 : index
    %c0_3 = arith.constant 0 : index
    %8 = vector.load %arg7[%c1, %c0_2, %c0_3] : memref<3x8x16xf32, #tpu.memory_space<vmem>>, vector<1x8x16xf32>
    %9 = vector.shape_cast %8 : vector<1x8x16xf32> to vector<8x16xf32>
    %c2 = arith.constant 2 : index
    %c0_4 = arith.constant 0 : index
    %c0_5 = arith.constant 0 : index
    %10 = vector.load %arg7[%c2, %c0_4, %c0_5] : memref<3x8x16xf32, #tpu.memory_space<vmem>>, vector<1x8x16xf32>
    %11 = vector.shape_cast %10 : vector<1x8x16xf32> to vector<8x16xf32>
    %cst = arith.constant dense<0.000000e+00> : vector<8x8xf32>
    %12 = tpu.matmul %7, %9, %cst {dimension_numbers = #tpu.dot_dimension_numbers<[1], [1], [0], [0], [0, 0, 1, 0], [], []>} : vector<8x16xf32>, vector<8x16xf32>, vector<8x8xf32> -> vector<8x8xf32>
    %cst_6 = arith.constant dense<0xFF800000> : vector<8xf32>
    %13 = vector.multi_reduction <maximumf>, %12, %cst_6 [1] : vector<8x8xf32> to vector<8xf32>
    %14 = vector.shape_cast %13 : vector<8xf32> to vector<8x1xf32>
    %15 = vector.broadcast %14 : vector<8x1xf32> to vector<8x8xf32>
    %16 = arith.subf %12, %15 : vector<8x8xf32>
    %17 = math.exp %16 : vector<8x8xf32>
    %cst_7 = arith.constant dense<0.000000e+00> : vector<8xf32>
    %18 = vector.multi_reduction <add>, %17, %cst_7 [1] : vector<8x8xf32> to vector<8xf32>
    %19 = vector.shape_cast %18 : vector<8xf32> to vector<8x1xf32>
    %20 = tpu.reciprocal %19 {approx = true} : vector<8x1xf32> -> vector<8x1xf32>
    %21 = vector.broadcast %20 : vector<8x1xf32> to vector<8x8xf32>
    %22 = arith.mulf %17, %21 : vector<8x8xf32>
    %cst_8 = arith.constant dense<0.000000e+00> : vector<8x16xf32>
    %23 = tpu.matmul %22, %11, %cst_8 {dimension_numbers = #tpu.dot_dimension_numbers<[1], [0], [0], [1], [0, 0, 1, 1], [], []>} : vector<8x8xf32>, vector<8x16xf32>, vector<8x16xf32> -> vector<8x16xf32>
    %c0_9 = arith.constant 0 : index
    %c0_10 = arith.constant 0 : index
    %24 = vector.load %arg4[%c0_9, %c0_10] : memref<16x16xf32, #tpu.memory_space<vmem>>, vector<16x16xf32>
    %cst_11 = arith.constant dense<0.000000e+00> : vector<8x16xf32>
    %25 = tpu.matmul %23, %24, %cst_11 {dimension_numbers = #tpu.dot_dimension_numbers<[1], [0], [0], [1], [0, 0, 1, 1], [], []>} : vector<8x16xf32>, vector<16x16xf32>, vector<8x16xf32> -> vector<8x16xf32>
    %c0_12 = arith.constant 0 : index
    %c0_13 = arith.constant 0 : index
    %26 = vector.load %arg5[%c0_12, %c0_13] : memref<1x16xf32, #tpu.memory_space<vmem>>, vector<1x16xf32>
    %27 = vector.broadcast %26 : vector<1x16xf32> to vector<8x16xf32>
    %28 = arith.addf %25, %27 : vector<8x16xf32>
    %c2_14 = arith.constant 2 : index
    %29 = arith.index_cast %4 : i32 to index
    %c0_15 = arith.constant 0 : index
    %30 = vector.load %arg7[%c2_14, %29, %c0_15] : memref<3x8x16xf32, #tpu.memory_space<vmem>>, vector<1x8x16xf32>
    %31 = vector.shape_cast %30 : vector<1x8x16xf32> to vector<8x16xf32>
    %32 = arith.addf %31, %28 : vector<8x16xf32>
    %c0_16 = arith.constant 0 : index
    %c0_17 = arith.constant 0 : index
    %c0_18 = arith.constant 0 : index
    %33 = vector.load %arg6[%c0_16, %c0_17, %c0_18] : memref<1x8x16xf32, #tpu.memory_space<vmem>>, vector<1x8x16xf32>
    %34 = vector.shape_cast %33 : vector<1x8x16xf32> to vector<8x16xf32>
    %35 = vector.shape_cast %32 : vector<8x16xf32> to vector<1x8x16xf32>
    tpu.vector_store %arg6[%c0_16, %c0_17, %c0_18], %35 {strides = array<i32>} : memref<1x8x16xf32, #tpu.memory_space<vmem>>, vector<1x8x16xf32>,
    return
  }
  func.func @transform_0(%arg0: i32, %arg1: i32) -> (i32, i32, i32) {
    %c0_i32 = arith.constant 0 : i32
    %c0_i32_0 = arith.constant 0 : i32
    %c0_i32_1 = arith.constant 0 : i32
    return %arg0, %c0_i32, %c0_i32_0 : i32, i32, i32
  }
  func.func @transform_1(%arg0: i32, %arg1: i32) -> (i32, i32) {
    %c0_i32 = arith.constant 0 : i32
    %c0_i32_0 = arith.constant 0 : i32
    %c0_i32_1 = arith.constant 0 : i32
    return %c0_i32, %c0_i32_0 : i32, i32
  }
  func.func @transform_2(%arg0: i32, %arg1: i32) -> (i32, i32) {
    %c0_i32 = arith.constant 0 : i32
    %c0_i32_0 = arith.constant 0 : i32
    %c0_i32_1 = arith.constant 0 : i32
    return %c0_i32, %c0_i32_0 : i32, i32
  }
  func.func @transform_3(%arg0: i32, %arg1: i32) -> (i32, i32) {
    %c0_i32 = arith.constant 0 : i32
    %c0_i32_0 = arith.constant 0 : i32
    %c0_i32_1 = arith.constant 0 : i32
    return %c0_i32, %c0_i32_0 : i32, i32
  }
  func.func @transform_4(%arg0: i32, %arg1: i32) -> (i32, i32, i32) {
    %c0_i32 = arith.constant 0 : i32
    %c0_i32_0 = arith.constant 0 : i32
    return %arg0, %arg1, %c0_i32 : i32, i32, i32
  }
}

</mosaic_0001>

<llo_original>
// kernel: tpu_custom_call.1
$region0: #{tpu_custom_call.1}
  #allocation0 [shape = 'u32[]', space=smem, size = 0x4, offset = 0x4, fixed_abs, tag = 'smem constant byte address 0x4 - core index']
  #allocation1 [shape = 'u32[144,128]{1,0:T(1,128)}', space=vmem, size = 0x12000, scoped, tag = 'internal scratch']
  #allocation2 [shape = 'f32[3,8,16]{2,1,0:T(8,128)}', space=vmem, size = 0x3000, scoped, tag = 'scratch operand']
  %s0 = inlined_call_operand.hbm [shape: f32[2,8,32], index: 0, kind: input, shape index: {}]
  %s1 = inlined_call_operand.hbm [shape: f32[32,48], index: 1, kind: input, shape index: {}]
  %s2 = inlined_call_operand.hbm [shape: f32[16,16], index: 2, kind: input, shape index: {}]
  %s3 = inlined_call_operand.vmem [shape: f32[1,16], index: 3, kind: input, shape index: {}]
  %s4 = inlined_call_operand.hbm [shape: f32[2,8,16], index: 4, kind: output, shape index: {}]
  %s5 = sld [smem:[#allocation0]]
  $region65: #{tpu_custom_call.1} parent=0
    _
  %s7 = ssub.s32 1, %s5
  %s8 = scalar_select 0, %s7, %s5
  $region1: #{tpu_custom_call.1} parent=0
    #allocation3 [shape = 'u8[8192]{0}', space=vmem, size = 0x2000, scoped, tag = 'input window, operand 0']
    #allocation4 [shape = 's32[2]{0}', space=sflag, size = 0x8, scoped, tag = 'scoped memory for tpu_custom_call.1']
    #allocation5 [shape = 's32[2]{0}', space=sflag, size = 0x8, scoped, tag = 'scoped memory for tpu_custom_call.1']
    #allocation6 [shape = 'u8[16384]{0}', space=vmem, size = 0x4000, scoped, tag = 'input window, operand 1, single buffered']
    #allocation7 [shape = 's32[1]{0}', space=sflag, size = 0x4, scoped, tag = 'scoped memory for tpu_custom_call.1']
    #allocation8 [shape = 'u8[8192]{0}', space=vmem, size = 0x2000, scoped, tag = 'input window, operand 2, single buffered']
    #allocation9 [shape = 'u8[8192]{0}', space=vmem, size = 0x2000, scoped, tag = 'output window, operand 0']
    %9 = vsyncpa [#allocation4], 0
    %s10 = scalar_lea.sflag [#allocation4], 1
    %11 = vsyncpa %s10, 0
    %12 = vsyncpa [#allocation7], 0
    %13 = vsyncpa [#allocation5], 0
    %s14 = scalar_lea.sflag [#allocation5], 1
    %15 = vsyncpa %s14, 0
    loop: start=0, step=1, limit=4
    $region2: #{tpu_custom_call.1} parent=1 // loop_pre_header
      _
    $region3: #{tpu_custom_call.1} parent=1 // loop_header
      %s17 = sphi 0, %s21
      %p18 = scmp.ge.s32.totalorder %s17, 4
      %s24 = sphi 0, %s36
      %s25 = sphi 0, %s32
      %s26 = sphi 0, %s24
      %s27 = sphi 0, %s25
      %s28 = sphi 0, %s26
      %s29 = sphi 0, %s27
      %s39 = sphi 0, %s41
      %s42 = sphi 0, %s39
      %s43 = sphi 0, %s42
      %s59 = sphi 0, %s43
      %s63 = sphi 0, %s63
      %s65 = sphi 0, %s63
      %s66 = sphi 0, %s65
      %s80 = sphi 0, %s66
      %s84 = sphi 0, %s84
      %s86 = sphi 0, %s84
      %s87 = sphi 0, %s86
      %s101 = sphi 0, %s87
      %s105 = sphi 0, %s105
      %s107 = sphi 0, %s105
      %s108 = sphi 0, %s107
      %s122 = sphi 0, %s108
      %s130 = sphi 0, %s132
      %s133 = sphi 0, %s130
      %s134 = sphi 0, %s133
      %s150 = sphi 0, %s134
    $region4: #{tpu_custom_call.1} parent=1 // loop_header_branch
      %20 = sbr.rel (%p18) target = $region8
    $region5: #{tpu_custom_call.1} parent=1 // loop_body
      %s22 = ssub.s32 %s17, 1
      %s23 = ssub.s32 %s17, 2
      %s30 = sadd.s32 1, %s25
      %p31 = scmp.ge.s32.totalorder %s30, 1
      %s32 = scalar_select %p31, 0, %s30
      %s33 = sadd.s32 1, %s24
      %s34 = scalar_select %p31, %s33, %s24
      %p35 = scmp.ge.s32.totalorder %s34, 2
      %s36 = scalar_select %p35, 0, %s34
      %s37 = ssub.s32 %s24, %s36
      %p38 = scmp.eq.s32.totalorder %s37, 0
      %s40 = sadd.s32 %s39, 1
      %s41 = scalar_select %p38, %s39, %s40
      %p44 = pneg %p38
      %p45 = scmp.eq.s32.totalorder %s17, 1
      %p46 = por %p44, %p45
      %p47 = scmp.ne.s32.totalorder %s39, %s42
      %p48 = scmp.eq.s32.totalorder %s17, 0
      %p49 = por %p47, %p48
      %p50 = scmp.ne.s32.totalorder %s39, %s42
      %p51 = scmp.eq.s32.totalorder %s22, 1
      %p52 = por %p50, %p51
      %p53 = scmp.ne.s32.totalorder %s42, %s43
      %p54 = scmp.eq.s32.totalorder %s22, 0
      %p55 = por %p53, %p54
      %p56 = scmp.ne.s32.totalorder %s42, %s43
      %p57 = scmp.eq.s32.totalorder %s23, 1
      %p58 = por %p56, %p57
      %p60 = scmp.ne.s32.totalorder %s43, %s59
      %p61 = scmp.eq.s32.totalorder %s23, 0
      %p62 = por %p60, %p61
      %s64 = sadd.s32 %s63, 1
      %p67 = scmp.eq.s32.totalorder %s17, 1
      %p68 = scmp.ne.s32.totalorder %s63, %s65
      %p69 = scmp.eq.s32.totalorder %s17, 0
      %p70 = por %p68, %p69
      %p71 = scmp.ne.s32.totalorder %s63, %s65
      %p72 = scmp.eq.s32.totalorder %s22, 1
      %p73 = por %p71, %p72
      %p74 = scmp.ne.s32.totalorder %s65, %s66
      %p75 = scmp.eq.s32.totalorder %s22, 0
      %p76 = por %p74, %p75
      %p77 = scmp.ne.s32.totalorder %s65, %s66
      %p78 = scmp.eq.s32.totalorder %s23, 1
      %p79 = por %p77, %p78
      %p81 = scmp.ne.s32.totalorder %s66, %s80
      %p82 = scmp.eq.s32.totalorder %s23, 0
      %p83 = por %p81, %p82
      %s85 = sadd.s32 %s84, 1
      %p88 = scmp.eq.s32.totalorder %s17, 1
      %p89 = scmp.ne.s32.totalorder %s84, %s86
      %p90 = scmp.eq.s32.totalorder %s17, 0
      %p91 = por %p89, %p90
      %p92 = scmp.ne.s32.totalorder %s84, %s86
      %p93 = scmp.eq.s32.totalorder %s22, 1
      %p94 = por %p92, %p93
      %p95 = scmp.ne.s32.totalorder %s86, %s87
      %p96 = scmp.eq.s32.totalorder %s22, 0
      %p97 = por %p95, %p96
      %p98 = scmp.ne.s32.totalorder %s86, %s87
      %p99 = scmp.eq.s32.totalorder %s23, 1
      %p100 = por %p98, %p99
      %p102 = scmp.ne.s32.totalorder %s87, %s101
      %p103 = scmp.eq.s32.totalorder %s23, 0
      %p104 = por %p102, %p103
      %s106 = sadd.s32 %s105, 1
      %p109 = scmp.eq.s32.totalorder %s17, 1
      %p110 = scmp.ne.s32.totalorder %s105, %s107
      %p111 = scmp.eq.s32.totalorder %s17, 0
      %p112 = por %p110, %p111
      %p113 = scmp.ne.s32.totalorder %s105, %s107
      %p114 = scmp.eq.s32.totalorder %s22, 1
      %p115 = por %p113, %p114
      %p116 = scmp.ne.s32.totalorder %s107, %s108
      %p117 = scmp.eq.s32.totalorder %s22, 0
      %p118 = por %p116, %p117
      %p119 = scmp.ne.s32.totalorder %s107, %s108
      %p120 = scmp.eq.s32.totalorder %s23, 1
      %p121 = por %p119, %p120
      %p123 = scmp.ne.s32.totalorder %s108, %s122
      %p124 = scmp.eq.s32.totalorder %s23, 0
      %p125 = por %p123, %p124
      %s126 = ssub.s32 %s24, %s36
      %s127 = ssub.s32 %s25, %s32
      %s128 = sor.u32 %s126, %s127
      %p129 = scmp.eq.s32.totalorder %s128, 0
      %s131 = sadd.s32 %s130, 1
      %s132 = scalar_select %p129, %s130, %s131
      %p135 = pneg %p129
      %p136 = scmp.eq.s32.totalorder %s17, 1
      %p137 = por %p135, %p136
      %p138 = scmp.ne.s32.totalorder %s130, %s133
      %p139 = scmp.eq.s32.totalorder %s17, 0
      %p140 = por %p138, %p139
      %p141 = scmp.ne.s32.totalorder %s130, %s133
      %p142 = scmp.eq.s32.totalorder %s22, 1
      %p143 = por %p141, %p142
      %p144 = scmp.ne.s32.totalorder %s133, %s134
      %p145 = scmp.eq.s32.totalorder %s22, 0
      %p146 = por %p144, %p145
      %p147 = scmp.ne.s32.totalorder %s133, %s134
      %p148 = scmp.eq.s32.totalorder %s23, 1
      %p149 = por %p147, %p148
      %p151 = scmp.ne.s32.totalorder %s134, %s150
      %p152 = scmp.eq.s32.totalorder %s23, 0
      %p153 = por %p151, %p152
      %p154 = scmp.le.s32.totalorder 1, %s17
      %p155 = scmp.lt.s32.totalorder %s17, 3
      %p156 = pnand %p154, %p155
      %p157 = pneg %p156
      // Predicated region
      $region9: #{tpu_custom_call.1} parent=5 // pred_check
        _
      $region10: #{tpu_custom_call.1} parent=5 // pred_check_branch
        %159 = sbr.rel (%p156) target = $region12
      $region11: #{tpu_custom_call.1} parent=5 // pred_region
        %s160 = ssub.s32 %s17, 1
        // Predicated region
        $region13: #{tpu_custom_call.1} parent=11 // pred_check
          %p161 = pneg %p76
        $region14: #{tpu_custom_call.1} parent=11 // pred_check_branch
          %163 = sbr.rel (%p161) target = $region16
        $region15: #{tpu_custom_call.1} parent=11 // pred_region
          %s165 = ssub.s32 512, 512
          %166 = vsyncadd [#allocation7], %s165
          %s167 = sshll.u32 [#allocation6], 4
          %s168 = int_to_ptr.vmem [resolvable:$true] %s167
          %173 = dma.hbm_to_vmem [thread:$0]  %s1, 512, %s168, [#allocation7], 128, 128, 8
        $region16: #{tpu_custom_call.1} parent=11 // pred_fallthru
          _
        // Predicated region
        $region17: #{tpu_custom_call.1} parent=11 // pred_check
          %p174 = pneg %p97
        $region18: #{tpu_custom_call.1} parent=11 // pred_check_branch
          %176 = sbr.rel (%p174) target = $region20
        $region19: #{tpu_custom_call.1} parent=11 // pred_region
          %s178 = ssub.s32 256, 256
          %179 = vsyncadd [#allocation7], %s178
          %s180 = sshll.u32 [#allocation8], 4
          %s181 = int_to_ptr.vmem [resolvable:$true] %s180
          %186 = dma.hbm_to_vmem [thread:$0]  %s2, 256, %s181, [#allocation7], 128, 128, 8
        $region20: #{tpu_custom_call.1} parent=11 // pred_fallthru
          _
        // Predicated region
        $region21: #{tpu_custom_call.1} parent=11 // pred_check
          %p187 = pneg %p118
        $region22: #{tpu_custom_call.1} parent=11 // pred_check_branch
          %189 = sbr.rel (%p187) target = $region24
        $region23: #{tpu_custom_call.1} parent=11 // pred_region
          _
        $region24: #{tpu_custom_call.1} parent=11 // pred_fallthru
          _
      $region12: #{tpu_custom_call.1} parent=5 // pred_fallthru
        _
      %p190 = scmp.lt.s32.totalorder %s17, 2
      // Predicated region
      $region25: #{tpu_custom_call.1} parent=5 // pred_check
        %p191 = pneg %p190
      $region26: #{tpu_custom_call.1} parent=5 // pred_check_branch
        %193 = sbr.rel (%p191) target = $region28
      $region27: #{tpu_custom_call.1} parent=5 // pred_region
        // Predicated region
        $region29: #{tpu_custom_call.1} parent=27 // pred_check
          %p194 = pneg %p49
        $region30: #{tpu_custom_call.1} parent=27 // pred_check_branch
          %196 = sbr.rel (%p194) target = $region32
        $region31: #{tpu_custom_call.1} parent=27 // pred_region
          %s197 = sand.u32 %s39, 1
          %s198 = scalar_lea.sflag [#allocation4], %s197
          %s199 = sand.u32 %s39, 1
          %s200 = smul.addr %s199, 8
          %s201 = scalar_lea.vmem [#allocation3], %s200
          %s203 = ssub.s32 128, 128
          %204 = vsyncadd %s198, %s203
          %s205 = smul.addr %s24, 128
          %s206 = scalar_lea.hbm %s0, %s205
          %s208 = sshll.u32 %s201, 4
          %s209 = int_to_ptr.vmem [resolvable:$true] %s208
          %211 = dma.hbm_to_vmem [thread:$0]  %s206, 128, %s209, %s198
        $region32: #{tpu_custom_call.1} parent=27 // pred_fallthru
          _
      $region28: #{tpu_custom_call.1} parent=5 // pred_fallthru
        _
      %p212 = scmp.le.s32.totalorder 1, %s17
      %p213 = scmp.lt.s32.totalorder %s17, 3
      %p214 = pnand %p212, %p213
      %p215 = pneg %p214
      // Predicated region
      $region33: #{tpu_custom_call.1} parent=5 // pred_check
        _
      $region34: #{tpu_custom_call.1} parent=5 // pred_check_branch
        %217 = sbr.rel (%p214) target = $region36
      $region35: #{tpu_custom_call.1} parent=5 // pred_region
        %s218 = ssub.s32 %s17, 1
        %s219 = sand.u32 %s42, 1
        %s220 = scalar_lea.sflag [#allocation4], %s219
        %s221 = sand.u32 %s42, 1
        %s222 = smul.addr %s221, 8
        %s223 = scalar_lea.vmem [#allocation3], %s222
        // Predicated region
        $region37: #{tpu_custom_call.1} parent=35 // pred_check
          %p224 = pneg %p55
        $region38: #{tpu_custom_call.1} parent=35 // pred_check_branch
          %226 = sbr.rel (%p224) target = $region40
        $region39: #{tpu_custom_call.1} parent=35 // pred_region
          %227 = dma.done %s220, 128
        $region40: #{tpu_custom_call.1} parent=35 // pred_fallthru
          _
        // Predicated region
        $region41: #{tpu_custom_call.1} parent=35 // pred_check
          %p228 = pneg %p76
        $region42: #{tpu_custom_call.1} parent=35 // pred_check_branch
          %230 = sbr.rel (%p228) target = $region44
        $region43: #{tpu_custom_call.1} parent=35 // pred_region
          %231 = dma.done [#allocation7], 512
        $region44: #{tpu_custom_call.1} parent=35 // pred_fallthru
          _
        // Predicated region
        $region45: #{tpu_custom_call.1} parent=35 // pred_check
          %p232 = pneg %p97
        $region46: #{tpu_custom_call.1} parent=35 // pred_check_branch
          %234 = sbr.rel (%p232) target = $region48
        $region47: #{tpu_custom_call.1} parent=35 // pred_region
          %235 = dma.done [#allocation7], 256
        $region48: #{tpu_custom_call.1} parent=35 // pred_fallthru
          _
        %s236 = sand.u32 %s42, 1
        %s237 = scalar_lea.sflag [#allocation4], %s236
        %s238 = sand.u32 %s42, 1
        %s239 = smul.addr %s238, 8
        %s240 = scalar_lea.vmem [#allocation3], %s239
        %p241 = pneg %p55
        %p242 = pneg %p52
        %p243 = pneg %p76
        %p244 = pneg %p73
        %p245 = pneg %p97
        %p246 = pneg %p94
        %p247 = pneg %p118
        %p248 = pneg %p115
        %p249 = pneg %p146
        %p250 = pneg %p143
        %s251 = sand.u32 %s133, 1
        %s252 = scalar_lea.sflag [#allocation5], %s251
        %s253 = sand.u32 %s133, 1
        %s254 = smul.addr %s253, 8
        %s255 = scalar_lea.vmem [#allocation9], %s254
        %p256 = scmp.eq.s32.totalorder %s27, 0
        // Predicated region
        $region49: #{tpu_custom_call.1} parent=35 // pred_check
          %p257 = pneg %p256
        $region50: #{tpu_custom_call.1} parent=35 // pred_check_branch
          %259 = sbr.rel (%p257) target = $region52
        $region51: #{tpu_custom_call.1} parent=35 // pred_region
          %v260 = vld [vmem:[%s223] sm:$0xff]
          %v261 = vld [vmem:[#allocation6] sm:$0xff]
          %v262 = vld [vmem:[#allocation6 + $0x8] sm:$0xff]
          %v263 = vld [vmem:[#allocation6 + $0x10] sm:$0xff]
          %v264 = vld [vmem:[#allocation6 + $0x18] sm:$0xff]
          %vm265 = vcmask 261120
          %v267 = vsel %vm265, %v260, 0
          %269 = vmatprep.subr.mxu0 0.0
          %270 = vmatpush1.msra.mxu0 0.0
          %271 = vmatprep.subr.mxu0 0.0
          %272 = vmatpush1.msra.mxu0 0.0
          %273 = vmatprep.subr.mxu0 0.0
          %274 = vmatpush1.msra.mxu0 0.0
          %275 = vmatprep.subr.mxu0 0.0
          %276 = vmatpush1.msra.mxu0 0.0
          %277 = vmatprep.subr.mxu0 0.0
          %278 = vmatpush1.msra.mxu0 0.0
          %279 = vmatprep.subr.mxu0 0.0
          %280 = vmatpush1.msra.mxu0 0.0
          %281 = vmatprep.subr.mxu0 0.0
          %282 = vmatpush1.msra.mxu0 0.0
          %283 = vmatprep.subr.mxu0 0.0
          %284 = vmatpush1.msra.mxu0 0.0
          %285 = vmatprep.subr.mxu0 0.0
          %286 = vmatpush1.msra.mxu0 0.0
          %287 = vmatprep.subr.mxu0 0.0
          %288 = vmatpush1.msra.mxu0 0.0
          %289 = vmatprep.subr.mxu0 0.0
          %290 = vmatpush1.msra.mxu0 0.0
          %291 = vmatprep.subr.mxu0 0.0
          %292 = vmatpush1.msra.mxu0 0.0
          %293 = vmatprep.subr.mxu0 0.0
          %294 = vmatpush1.msra.mxu0 %v264
          %295 = vmatprep.subr.mxu0 0.0
          %296 = vmatpush1.msra.mxu0 %v263
          %297 = vmatprep.subr.mxu0 0.0
          %298 = vmatpush1.msra.mxu0 %v262
          %299 = vmatprep.subr.mxu0 0.0
          %300 = vmatpush1.msra.mxu0 %v261
          %301 = vmatprep.subr.mxu0 0.0
          %302 = vmatpush2.msra.mxu0 0.0
          %303 = vmatprep.subr.mxu0 0.0
          %304 = vmatpush2.msra.mxu0 0.0
          %305 = vmatprep.subr.mxu0 0.0
          %306 = vmatpush2.msra.mxu0 0.0
          %307 = vmatprep.subr.mxu0 0.0
          %308 = vmatpush2.msra.mxu0 0.0
          %309 = vmatprep.subr.mxu0 0.0
          %310 = vmatpush2.msra.mxu0 0.0
          %311 = vmatprep.subr.mxu0 0.0
          %312 = vmatpush2.msra.mxu0 0.0
          %313 = vmatprep.subr.mxu0 0.0
          %314 = vmatpush2.msra.mxu0 0.0
          %315 = vmatprep.subr.mxu0 0.0
          %316 = vmatpush2.msra.mxu0 0.0
          %317 = vmatprep.subr.mxu0 0.0
          %318 = vmatpush2.msra.mxu0 0.0
          %319 = vmatprep.subr.mxu0 0.0
          %320 = vmatpush2.msra.mxu0 0.0
          %321 = vmatprep.subr.mxu0 0.0
          %322 = vmatpush2.msra.mxu0 0.0
          %323 = vmatprep.subr.mxu0 0.0
          %324 = vmatpush2.msra.mxu0 0.0
          %325 = vmatprep.subr.mxu0 0.0
          %326 = vmatpush2.msra.mxu0 0.0
          %327 = vmatprep.subr.mxu0 0.0
          %328 = vmatpush2.msra.mxu0 0.0
          %329 = vmatprep.subr.mxu0 0.0
          %330 = vmatpush2.msra.mxu0 0.0
          %331 = vmatprep.subr.mxu0 0.0
          %332 = vmatpush2.msra.mxu0 0.0
          %333 = vmatprep.mubr.f32.mxu0 0.0
          %334 = vmatmul.mubr.f32.gmra.mxu0 %v267
          %v335 = vpop.f32.mrf.mxu0
          %v336 = vadd.f32 0.0, %v335
          %v337 = vpop.f32.mrf.mxu0
          %338 = vdwg.mxu0
          %vm339 = vcmask 130048
          %340 = vst.msk [vmem:[#allocation2] sm:$0xff] %vm339, %v336
          %342 = vrot.lane.b32.xlu0 %v336, 112
          %v343 = vpop.permute.xlu0 %342
          %s345 = scalar_lea.vmem [#allocation2], 8
          %346 = vst.msk [vmem:[%s345] sm:$0xff] %vm339, %v343
          %347 = vrot.lane.b32.xlu0 %v336, 96
          %v348 = vpop.permute.xlu0 %347
          %s350 = scalar_lea.vmem [#allocation2], 16
          %351 = vst.msk [vmem:[%s350] sm:$0xff] %vm339, %v348
        $region52: #{tpu_custom_call.1} parent=35 // pred_fallthru
          _
        %s352 = smul.u32 %s27, 8
        %s353 = scalar_lea.vmem [#allocation2], %s352
        %v354 = vld [vmem:[%s353] sm:$0xff]
        %s355 = scalar_lea.vmem [#allocation2], 8
        %v356 = vld [vmem:[%s355] sm:$0xff]
        %s357 = scalar_lea.vmem [#allocation2], 16
        %v358 = vld [vmem:[%s357] sm:$0xff]
        %vm359 = vcmask 130048
        %v361 = vsel %vm359, %v354, 0
        %v364 = vsel %vm359, %v356, 0
        %366 = vmatprep.subr.mxu0 0.0
        %367 = vmatpush1.xpose.msra.mxu0 0.0
        %368 = vmatprep.subr.mxu0 0.0
        %369 = vmatpush1.xpose.msra.mxu0 0.0
        %370 = vmatprep.subr.mxu0 0.0
        %371 = vmatpush1.xpose.msra.mxu0 0.0
        %372 = vmatprep.subr.mxu0 0.0
        %373 = vmatpush1.xpose.msra.mxu0 0.0
        %374 = vmatprep.subr.mxu0 0.0
        %375 = vmatpush1.xpose.msra.mxu0 0.0
        %376 = vmatprep.subr.mxu0 0.0
        %377 = vmatpush1.xpose.msra.mxu0 0.0
        %378 = vmatprep.subr.mxu0 0.0
        %379 = vmatpush1.xpose.msra.mxu0 0.0
        %380 = vmatprep.subr.mxu0 0.0
        %381 = vmatpush1.xpose.msra.mxu0 0.0
        %382 = vmatprep.subr.mxu0 0.0
        %383 = vmatpush1.xpose.msra.mxu0 0.0
        %384 = vmatprep.subr.mxu0 0.0
        %385 = vmatpush1.xpose.msra.mxu0 0.0
        %386 = vmatprep.subr.mxu0 0.0
        %387 = vmatpush1.xpose.msra.mxu0 0.0
        %388 = vmatprep.subr.mxu0 0.0
        %389 = vmatpush1.xpose.msra.mxu0 0.0
        %390 = vmatprep.subr.mxu0 0.0
        %391 = vmatpush1.xpose.msra.mxu0 0.0
        %392 = vmatprep.subr.mxu0 0.0
        %393 = vmatpush1.xpose.msra.mxu0 0.0
        %394 = vmatprep.subr.mxu0 0.0
        %395 = vmatpush1.xpose.msra.mxu0 0.0
        %396 = vmatprep.subr.mxu0 0.0
        %397 = vmatpush1.xpose.msra.mxu0 %v364
        %398 = vmatprep.subr.mxu0 0.0
        %399 = vmatpush2.xpose.msra.mxu0 0.0
        %400 = vmatprep.subr.mxu0 0.0
        %401 = vmatpush2.xpose.msra.mxu0 0.0
        %402 = vmatprep.subr.mxu0 0.0
        %403 = vmatpush2.xpose.msra.mxu0 0.0
        %404 = vmatprep.subr.mxu0 0.0
        %405 = vmatpush2.xpose.msra.mxu0 0.0
        %406 = vmatprep.subr.mxu0 0.0
        %407 = vmatpush2.xpose.msra.mxu0 0.0
        %408 = vmatprep.subr.mxu0 0.0
        %409 = vmatpush2.xpose.msra.mxu0 0.0
        %410 = vmatprep.subr.mxu0 0.0
        %411 = vmatpush2.xpose.msra.mxu0 0.0
        %412 = vmatprep.subr.mxu0 0.0
        %413 = vmatpush2.xpose.msra.mxu0 0.0
        %414 = vmatprep.subr.mxu0 0.0
        %415 = vmatpush2.xpose.msra.mxu0 0.0
        %416 = vmatprep.subr.mxu0 0.0
        %417 = vmatpush2.xpose.msra.mxu0 0.0
        %418 = vmatprep.subr.mxu0 0.0
        %419 = vmatpush2.xpose.msra.mxu0 0.0
        %420 = vmatprep.subr.mxu0 0.0
        %421 = vmatpush2.xpose.msra.mxu0 0.0
        %422 = vmatprep.subr.mxu0 0.0
        %423 = vmatpush2.xpose.msra.mxu0 0.0
        %424 = vmatprep.subr.mxu0 0.0
        %425 = vmatpush2.xpose.msra.mxu0 0.0
        %426 = vmatprep.subr.mxu0 0.0
        %427 = vmatpush2.xpose.msra.mxu0 0.0
        %428 = vmatprep.subr.mxu0 0.0
        %429 = vmatpush2.xpose.msra.mxu0 0.0
        %430 = vmatprep.mubr.f32.mxu0 0.0
        %431 = vmatmul.mubr.f32.gmra.mxu0 %v361
        %v432 = vpop.f32.mrf.mxu0
        %v433 = vadd.f32 0.0, %v432
        %v434 = vpop.f32.mrf.mxu0
        %435 = vdwg.mxu0
        %vm436 = vcmask 64512
        %v437 = vsel %vm436, %v433, -inf
        %438 = vmax.xlane.f32.xlu0 %v437
        %v439 = vpop.xlane.xlu0 %438
        %v440 = vsub.f32 %v433, %v439
        %v441 = vmul.f32 %v440, 1.442695
        %v442 = vpow.pop %v441
        %v443 = vsel %vm436, %v442, 0.0
        %444 = vadd.xlane.f32.xlu0 %v443
        %v445 = vpop.xlane.xlu0 %444
        %v446 = vrcp.pop %v445
        %v447 = vmul.f32 %v442, %v446
        %v449 = vsel %vm436, %v447, 0
        %451 = vmatprep.subr.mxu0 0.0
        %452 = vmatpush1.msra.mxu0 0.0
        %453 = vmatprep.subr.mxu0 0.0
        %454 = vmatpush1.msra.mxu0 0.0
        %455 = vmatprep.subr.mxu0 0.0
        %456 = vmatpush1.msra.mxu0 0.0
        %457 = vmatprep.subr.mxu0 0.0
        %458 = vmatpush1.msra.mxu0 0.0
        %459 = vmatprep.subr.mxu0 0.0
        %460 = vmatpush1.msra.mxu0 0.0
        %461 = vmatprep.subr.mxu0 0.0
        %462 = vmatpush1.msra.mxu0 0.0
        %463 = vmatprep.subr.mxu0 0.0
        %464 = vmatpush1.msra.mxu0 0.0
        %465 = vmatprep.subr.mxu0 0.0
        %466 = vmatpush1.msra.mxu0 0.0
        %467 = vmatprep.subr.mxu0 0.0
        %468 = vmatpush1.msra.mxu0 0.0
        %469 = vmatprep.subr.mxu0 0.0
        %470 = vmatpush1.msra.mxu0 0.0
        %471 = vmatprep.subr.mxu0 0.0
        %472 = vmatpush1.msra.mxu0 0.0
        %473 = vmatprep.subr.mxu0 0.0
        %474 = vmatpush1.msra.mxu0 0.0
        %475 = vmatprep.subr.mxu0 0.0
        %476 = vmatpush1.msra.mxu0 0.0
        %477 = vmatprep.subr.mxu0 0.0
        %478 = vmatpush1.msra.mxu0 0.0
        %479 = vmatprep.subr.mxu0 0.0
        %480 = vmatpush1.msra.mxu0 0.0
        %481 = vmatprep.subr.mxu0 0.0
        %482 = vmatpush1.msra.mxu0 %v358
        %483 = vmatprep.subr.mxu0 0.0
        %484 = vmatpush2.msra.mxu0 0.0
        %485 = vmatprep.subr.mxu0 0.0
        %486 = vmatpush2.msra.mxu0 0.0
        %487 = vmatprep.subr.mxu0 0.0
        %488 = vmatpush2.msra.mxu0 0.0
        %489 = vmatprep.subr.mxu0 0.0
        %490 = vmatpush2.msra.mxu0 0.0
        %491 = vmatprep.subr.mxu0 0.0
        %492 = vmatpush2.msra.mxu0 0.0
        %493 = vmatprep.subr.mxu0 0.0
        %494 = vmatpush2.msra.mxu0 0.0
        %495 = vmatprep.subr.mxu0 0.0
        %496 = vmatpush2.msra.mxu0 0.0
        %497 = vmatprep.subr.mxu0 0.0
        %498 = vmatpush2.msra.mxu0 0.0
        %499 = vmatprep.subr.mxu0 0.0
        %500 = vmatpush2.msra.mxu0 0.0
        %501 = vmatprep.subr.mxu0 0.0
        %502 = vmatpush2.msra.mxu0 0.0
        %503 = vmatprep.subr.mxu0 0.0
        %504 = vmatpush2.msra.mxu0 0.0
        %505 = vmatprep.subr.mxu0 0.0
        %506 = vmatpush2.msra.mxu0 0.0
        %507 = vmatprep.subr.mxu0 0.0
        %508 = vmatpush2.msra.mxu0 0.0
        %509 = vmatprep.subr.mxu0 0.0
        %510 = vmatpush2.msra.mxu0 0.0
        %511 = vmatprep.subr.mxu0 0.0
        %512 = vmatpush2.msra.mxu0 0.0
        %513 = vmatprep.subr.mxu0 0.0
        %514 = vmatpush2.msra.mxu0 0.0
        %515 = vmatprep.mubr.f32.mxu0 0.0
        %516 = vmatmul.mubr.f32.gmra.mxu0 %v449
        %v517 = vpop.f32.mrf.mxu0
        %v518 = vadd.f32 0.0, %v517
        %v519 = vpop.f32.mrf.mxu0
        %520 = vdwg.mxu0
        %v521 = vld [vmem:[#allocation8] sm:$0xff]
        %v522 = vld [vmem:[#allocation8 + $0x8] sm:$0xff]
        %v523 = vld [vmem:[%s3] sm:$0x1]
        %v525 = vlaneseq
        %v526 = vshrl.u32 %v525, 7
        %v527 = vsub.s32 0, %v526
        %v528 = vrot.slane %v523, %v527
        %v531 = vsel %vm359, %v518, 0
        %533 = vmatprep.subr.mxu0 0.0
        %534 = vmatpush1.msra.mxu0 0.0
        %535 = vmatprep.subr.mxu0 0.0
        %536 = vmatpush1.msra.mxu0 0.0
        %537 = vmatprep.subr.mxu0 0.0
        %538 = vmatpush1.msra.mxu0 0.0
        %539 = vmatprep.subr.mxu0 0.0
        %540 = vmatpush1.msra.mxu0 0.0
        %541 = vmatprep.subr.mxu0 0.0
        %542 = vmatpush1.msra.mxu0 0.0
        %543 = vmatprep.subr.mxu0 0.0
        %544 = vmatpush1.msra.mxu0 0.0
        %545 = vmatprep.subr.mxu0 0.0
        %546 = vmatpush1.msra.mxu0 0.0
        %547 = vmatprep.subr.mxu0 0.0
        %548 = vmatpush1.msra.mxu0 0.0
        %549 = vmatprep.subr.mxu0 0.0
        %550 = vmatpush1.msra.mxu0 0.0
        %551 = vmatprep.subr.mxu0 0.0
        %552 = vmatpush1.msra.mxu0 0.0
        %553 = vmatprep.subr.mxu0 0.0
        %554 = vmatpush1.msra.mxu0 0.0
        %555 = vmatprep.subr.mxu0 0.0
        %556 = vmatpush1.msra.mxu0 0.0
        %557 = vmatprep.subr.mxu0 0.0
        %558 = vmatpush1.msra.mxu0 0.0
        %559 = vmatprep.subr.mxu0 0.0
        %560 = vmatpush1.msra.mxu0 0.0
        %561 = vmatprep.subr.mxu0 0.0
        %562 = vmatpush1.msra.mxu0 %v522
        %563 = vmatprep.subr.mxu0 0.0
        %564 = vmatpush1.msra.mxu0 %v521
        %565 = vmatprep.subr.mxu0 0.0
        %566 = vmatpush2.msra.mxu0 0.0
        %567 = vmatprep.subr.mxu0 0.0
        %568 = vmatpush2.msra.mxu0 0.0
        %569 = vmatprep.subr.mxu0 0.0
        %570 = vmatpush2.msra.mxu0 0.0
        %571 = vmatprep.subr.mxu0 0.0
        %572 = vmatpush2.msra.mxu0 0.0
        %573 = vmatprep.subr.mxu0 0.0
        %574 = vmatpush2.msra.mxu0 0.0
        %575 = vmatprep.subr.mxu0 0.0
        %576 = vmatpush2.msra.mxu0 0.0
        %577 = vmatprep.subr.mxu0 0.0
        %578 = vmatpush2.msra.mxu0 0.0
        %579 = vmatprep.subr.mxu0 0.0
        %580 = vmatpush2.msra.mxu0 0.0
        %581 = vmatprep.subr.mxu0 0.0
        %582 = vmatpush2.msra.mxu0 0.0
        %583 = vmatprep.subr.mxu0 0.0
        %584 = vmatpush2.msra.mxu0 0.0
        %585 = vmatprep.subr.mxu0 0.0
        %586 = vmatpush2.msra.mxu0 0.0
        %587 = vmatprep.subr.mxu0 0.0
        %588 = vmatpush2.msra.mxu0 0.0
        %589 = vmatprep.subr.mxu0 0.0
        %590 = vmatpush2.msra.mxu0 0.0
        %591 = vmatprep.subr.mxu0 0.0
        %592 = vmatpush2.msra.mxu0 0.0
        %593 = vmatprep.subr.mxu0 0.0
        %594 = vmatpush2.msra.mxu0 0.0
        %595 = vmatprep.subr.mxu0 0.0
        %596 = vmatpush2.msra.mxu0 0.0
        %597 = vmatprep.mubr.f32.mxu0 0.0
        %598 = vmatmul.mubr.f32.gmra.mxu0 %v531
        %v599 = vpop.f32.mrf.mxu0
        %v600 = vadd.f32 %v528, %v599
        %v601 = vpop.f32.mrf.mxu0
        %602 = vdwg.mxu0
        %s603 = sadd.s32 %s352, 16
        %s604 = scalar_lea.vmem [#allocation2], %s603
        %v605 = vld [vmem:[%s604] sm:$0xff]
        %v606 = vadd.f32 %v605, %v600
        %607 = vst.msk [vmem:[%s255] sm:$0xff] %vm359, %v606
        %s608 = sand.u32 %s133, 1
        %s609 = scalar_lea.sflag [#allocation5], %s608
        %s610 = sand.u32 %s133, 1
        %s611 = smul.addr %s610, 8
        %s612 = scalar_lea.vmem [#allocation9], %s611
        // Predicated region
        $region53: #{tpu_custom_call.1} parent=35 // pred_check
          %p613 = pneg %p143
        $region54: #{tpu_custom_call.1} parent=35 // pred_check_branch
          %615 = sbr.rel (%p613) target = $region56
        $region55: #{tpu_custom_call.1} parent=35 // pred_region
          %s617 = ssub.s32 128, 128
          %618 = vsyncadd %s609, %s617
          %s619 = sadd.s32 %s27, %s26
          %s620 = smul.addr %s619, 128
          %s621 = scalar_lea.hbm %s4, %s620
          %s623 = sshll.u32 %s612, 4
          %s624 = int_to_ptr.vmem [resolvable:$true] %s623
          %626 = dma.vmem_to_hbm [thread:$0]  %s624, 128, %s621, %s609
        $region56: #{tpu_custom_call.1} parent=35 // pred_fallthru
          _
      $region36: #{tpu_custom_call.1} parent=5 // pred_fallthru
        _
      %p627 = scmp.le.s32.totalorder 2, %s17
      // Predicated region
      $region57: #{tpu_custom_call.1} parent=5 // pred_check
        %p628 = pneg %p627
      $region58: #{tpu_custom_call.1} parent=5 // pred_check_branch
        %630 = sbr.rel (%p628) target = $region60
      $region59: #{tpu_custom_call.1} parent=5 // pred_region
        %s631 = ssub.s32 %s17, 2
        // Predicated region
        $region61: #{tpu_custom_call.1} parent=59 // pred_check
          %p632 = pneg %p149
        $region62: #{tpu_custom_call.1} parent=59 // pred_check_branch
          %634 = sbr.rel (%p632) target = $region64
        $region63: #{tpu_custom_call.1} parent=59 // pred_region
          %s635 = sand.u32 %s134, 1
          %s636 = scalar_lea.sflag [#allocation5], %s635
          %s637 = sand.u32 %s134, 1
          %s638 = smul.addr %s637, 8
          %s639 = scalar_lea.vmem [#allocation9], %s638
          %640 = dma.done %s636, 128
        $region64: #{tpu_custom_call.1} parent=59 // pred_fallthru
          _
      $region60: #{tpu_custom_call.1} parent=5 // pred_fallthru
        _
    $region6: #{tpu_custom_call.1} parent=1 // loop_footer
      %s21 = sadd.s32 1, %s17
    $region7: #{tpu_custom_call.1} parent=1 // loop_footer_branch
      %16 = sbr.rel target = $region3
    $region8: #{tpu_custom_call.1} parent=1 // loop_exit
      _
    %641 = vsyncpa [#allocation4], 1
    %s642 = scalar_lea.sflag [#allocation4], 1
    %643 = vsyncpa %s642, 1
    %644 = vsyncpa [#allocation7], 1
    %645 = vsyncpa [#allocation5], 1
    %s646 = scalar_lea.sflag [#allocation5], 1
    %647 = vsyncpa %s646, 1

</llo_original>
